<compile_context>
chip_gen: v6e
topology: v6e:2x2x1
jax: 0.10.0
libtpu: 0.0.40
codegen_flags: <defaults>
</compile_context>

<pallas_src>
import functools

import jax
import jax.numpy as jnp
from jax import lax
from jax.experimental import pallas as pl
from jax.experimental.pallas import tpu as pltpu

BN_EPS = 1e-5
_F32, _BF16 = 4, 2


def _bn_fold(h, gamma, beta, inv_b):
    """Training-mode BatchNorm1d (biased batch variance), one-pass stats, folded to one FMA. f32."""
    s = jnp.sum(h, axis=0, keepdims=True)
    ss = jnp.sum(h * h, axis=0, keepdims=True)
    mean = s * inv_b
    var = jnp.maximum(ss * inv_b - mean * mean, 0.0)
    scale = gamma * lax.rsqrt(var + BN_EPS)          # rsqrt -> EUP (free slot)
    shift = beta - mean * scale
    return h * scale + shift


# ---------------------------------------------------------------------------
# Kernels
# ---------------------------------------------------------------------------
def _fused_kernel(x_ref, w1_ref, w2_ref, g1_ref, be1_ref, g2_ref, be2_ref, o_ref, *, inv_b):
    # Whole problem resident in VMEM: both matmuls, both BNs, residual, ReLU in one call.
    x = x_ref[...]                                                      # (B, F) f32
    h = jnp.dot(x.astype(jnp.bfloat16), w1_ref[...],
                preferred_element_type=jnp.float32)
    h = jnp.maximum(_bn_fold(h, g1_ref[...], be1_ref[...], inv_b), 0.0)
    h2 = jnp.dot(h.astype(jnp.bfloat16), w2_ref[...],
                 preferred_element_type=jnp.float32)
    h2 = _bn_fold(h2, g2_ref[...], be2_ref[...], inv_b)
    o_ref[...] = jnp.maximum(h2 + x, 0.0).astype(o_ref.dtype)


def _stage1_kernel(x16_ref, w1_ref, g1_ref, be1_ref, h_ref, acc_ref, *, inv_b):
    # grid = (j: out-feature tile "parallel", k: reduction tile "arbitrary")
    k = pl.program_id(1)

    @pl.when(k == 0)
    def _init():
        acc_ref[...] = jnp.zeros_like(acc_ref)

    acc_ref[...] += jnp.dot(x16_ref[...], w1_ref[...],
                            preferred_element_type=jnp.float32)

    @pl.when(k == pl.num_programs(1) - 1)
    def _finalize():
        h = jnp.maximum(_bn_fold(acc_ref[...], g1_ref[...], be1_ref[...], inv_b), 0.0)
        h_ref[...] = h.astype(h_ref.dtype)


def _stage2_kernel(h_ref, w2_ref, x_ref, g2_ref, be2_ref, o_ref, *, inv_b):
    # grid = (j, k); the f32 output block is resident across k -> accumulate into it directly.
    k = pl.program_id(1)

    @pl.when(k == 0)
    def _init():
        o_ref[...] = jnp.zeros_like(o_ref)

    o_ref[...] += jnp.dot(h_ref[...], w2_ref[...],
                          preferred_element_type=jnp.float32)

    @pl.when(k == pl.num_programs(1) - 1)
    def _finalize():
        h2 = _bn_fold(o_ref[...], g2_ref[...], be2_ref[...], inv_b)
        o_ref[...] = jnp.maximum(h2 + x_ref[...], 0.0)


# ---------------------------------------------------------------------------
# Chip-aware configuration
# ---------------------------------------------------------------------------
def _chip_config():
    """Return (tn, tk, vmem_budget_bytes, fused_cap_bytes) for the local TPU generation."""
    kind = ""
    try:
        kind = jax.devices()[0].device_kind.lower()
    except Exception:
        pass
    vmem_cap = 128 << 20
    try:
        vmem_cap = int(pltpu.get_tpu_info().vmem_capacity_bytes)
    except Exception:
        pass
    small_vmem = vmem_cap <= (80 << 20)

    if "v5" in kind and ("lite" in kind or "v5e" in kind):
        # v5e: 128x128 MXU -> tn=128, large K tile to amortize per-step overhead; 128 MiB VMEM.
        tn, tk = 128, 512
        budget = min(vmem_cap * 3 // 4, 100 << 20)
        fused_cap = 48 << 20
    elif small_vmem or "7" in kind:
        # v7x: 256-wide MXU but only 64 MiB VMEM per TensorCore.
        tn, tk = 256, 256
        budget = min(vmem_cap * 3 // 4, 48 << 20)
        fused_cap = 24 << 20
    else:
        # v6e (and default): 256-wide MXU, 128 MiB VMEM.
        tn, tk = 256, 512
        budget = min(vmem_cap * 3 // 4, 100 << 20)
        fused_cap = 48 << 20
    return tn, tk, int(budget), int(fused_cap)


def _vmem_limit(resident_bytes, budget):
    # 2x headroom over the estimated resident set, clamped to the chip-aware budget.
    return int(min(max(2 * resident_bytes, 8 << 20), budget))


# ---------------------------------------------------------------------------
# Wrapper
# ---------------------------------------------------------------------------
def residual_block(x, params, *, tn=None, tk=None, force_tiled=False):
    """x: (B, F) float32. params: dict with w1, g1, beta1, w2, g2, beta2."""
    B, F = x.shape
    assert F % 128 == 0, "F must be a multiple of 128 (lane-dense feature blocks)"
    assert B % 16 == 0, "B must be a multiple of 16 (bf16 packs two rows per sublane)"

    cfg_tn, cfg_tk, budget, fused_cap = _chip_config()
    tn = int(tn) if tn is not None else cfg_tn
    tk = int(tk) if tk is not None else cfg_tk
    inv_b = 1.0 / B

    w1 = params["w1"].astype(jnp.bfloat16)
    w2 = params["w2"].astype(jnp.bfloat16)
    g1 = params["g1"].reshape(1, F).astype(jnp.float32)
    be1 = params["beta1"].reshape(1, F).astype(jnp.float32)
    g2 = params["g2"].reshape(1, F).astype(jnp.float32)
    be2 = params["beta2"].reshape(1, F).astype(jnp.float32)

    # ---------------- fused single-kernel fast path ----------------
    fused_bytes = (3 * B * F * _F32              # x, out, f32 temp
                   + 2 * B * F * _BF16           # bf16 copies of x and h feeding the MXU
                   + 2 * F * F * _BF16           # W1, W2
                   + 4 * F * _F32)               # BN affine params
    if not force_tiled and fused_bytes <= fused_cap:
        return pl.pallas_call(
            functools.partial(_fused_kernel, inv_b=inv_b),
            out_shape=jax.ShapeDtypeStruct((B, F), x.dtype),
            compiler_params=pltpu.CompilerParams(
                vmem_limit_bytes=_vmem_limit(fused_bytes, budget)),
            cost_estimate=pl.CostEstimate(
                flops=4 * B * F * F + 16 * B * F,
                transcendentals=2 * F,
                bytes_accessed=2 * B * F * _F32 + 2 * F * F * _BF16 + 4 * F * _F32),
        )(x, w1, w2, g1, be1, g2, be2)

    # ---------------- tiled two-stage path ----------------
    # Tiles must divide F; guarantee >= 2 j-tiles so both v7x TensorCores get work.
    tn = max(128, min(tn, F))
    while F % tn:
        tn //= 2
    tk = max(128, min(tk, F))
    while F % tk:
        tk //= 2
    if F // tn < 2:
        tn = max(F // 2, 128)
    assert F % tn == 0 and F % tk == 0 and tn % 128 == 0 and tk % 128 == 0
    n_j, n_k = F // tn, F // tk

    # Cast x to bf16 once here (stage-1 MXU operand); the f32 x is only read as the stage-2
    # residual.  Matches the reference dtype policy exactly and halves stage-1 x HBM traffic.
    x16 = x.astype(jnp.bfloat16)

    # stage 1: h = relu(bn1(x @ W1)) — K-tiled, f32 VMEM accumulator, finalize at last k.
    s1_resident = (2 * (B * tk * _BF16 + tk * tn * _BF16 + B * tn * _BF16)
                   + B * tn * _F32 + 8 * tn * _F32)
    h = pl.pallas_call(
        functools.partial(_stage1_kernel, inv_b=inv_b),
        out_shape=jax.ShapeDtypeStruct((B, F), jnp.bfloat16),
        grid_spec=pltpu.PrefetchScalarGridSpec(
            num_scalar_prefetch=0,
            grid=(n_j, n_k),
            in_specs=[
                pl.BlockSpec((B, tk), lambda j, k: (0, k)),     # x16 reduction block
                pl.BlockSpec((tk, tn), lambda j, k: (k, j)),    # W1 block
                pl.BlockSpec((1, tn), lambda j, k: (0, j)),     # gamma1 (k-invariant)
                pl.BlockSpec((1, tn), lambda j, k: (0, j)),     # beta1  (k-invariant)
            ],
            out_specs=pl.BlockSpec((B, tn), lambda j, k: (0, j)),
            scratch_shapes=[pltpu.VMEM((B, tn), jnp.float32)],
        ),
        compiler_params=pltpu.CompilerParams(
            dimension_semantics=("parallel", "arbitrary"),
            vmem_limit_bytes=_vmem_limit(s1_resident, budget)),
        cost_estimate=pl.CostEstimate(
            flops=2 * B * F * F + 8 * B * F,
            transcendentals=F,
            bytes_accessed=n_j * B * F * _BF16 + F * F * _BF16 + B * F * _BF16 + 2 * F * _F32),
    )(x16, w1, g1, be1)

    # stage 2: out = relu(bn2(h @ W2) + x) — accumulate directly into the resident f32 output.
    s2_resident = (2 * (B * tk * _BF16 + tk * tn * _BF16 + B * tn * _F32)
                   + B * tn * _F32 + 8 * tn * _F32)
    out = pl.pallas_call(
        functools.partial(_stage2_kernel, inv_b=inv_b),
        out_shape=jax.ShapeDtypeStruct((B, F), x.dtype),
        grid_spec=pltpu.PrefetchScalarGridSpec(
            num_scalar_prefetch=0,
            grid=(n_j, n_k),
            in_specs=[
                pl.BlockSpec((B, tk), lambda j, k: (0, k)),     # h reduction block
                pl.BlockSpec((tk, tn), lambda j, k: (k, j)),    # W2 block
                pl.BlockSpec((B, tn), lambda j, k: (0, j)),     # residual x block (k-invariant)
                pl.BlockSpec((1, tn), lambda j, k: (0, j)),     # gamma2 (k-invariant)
                pl.BlockSpec((1, tn), lambda j, k: (0, j)),     # beta2  (k-invariant)
            ],
            out_specs=pl.BlockSpec((B, tn), lambda j, k: (0, j)),
        ),
        compiler_params=pltpu.CompilerParams(
            dimension_semantics=("parallel", "arbitrary"),
            vmem_limit_bytes=_vmem_limit(s2_resident, budget)),
        cost_estimate=pl.CostEstimate(
            flops=2 * B * F * F + 10 * B * F,
            transcendentals=F,
            bytes_accessed=n_j * B * F * _BF16 + F * F * _BF16 + 2 * B * F * _F32 + 2 * F * _F32),
    )(h, w2, x, g2, be2)
    return out


# ---------------------------------------------------------------------------
# Params / reference
# ---------------------------------------------------------------------------
def init_params(key, F):
    """Deterministic init. LazyLinear biases intentionally omitted: a bias followed immediately
    by training-mode BatchNorm is cancelled exactly by the mean subtraction. BN affine params
    are randomized (instead of torch's ones/zeros) to exercise the path."""
    k1, k2, k3, k4 = jax.random.split(key, 4)
    bound = 1.0 / jnp.sqrt(F)
    return {
        "w1": jax.random.uniform(k1, (F, F), jnp.float32, -bound, bound),
        "g1": jax.random.uniform(k3, (F,), jnp.float32, 0.5, 1.5),
        "beta1": 0.1 * jax.random.normal(k4, (F,), jnp.float32),
        "w2": jax.random.uniform(k2, (F, F), jnp.float32, -bound, bound),
        "g2": jax.random.uniform(k4, (F,), jnp.float32, 0.5, 1.5),
        "beta2": 0.1 * jax.random.normal(k3, (F,), jnp.float32),
    }


def residual_block_ref(x, p):
    """Pure-JAX reference with the same MXU dtype policy (bf16 operands, f32 accumulation,
    f32 BatchNorm math) as the kernels."""
    def bn(h, g, b):
        m = jnp.mean(h, axis=0, keepdims=True)
        v = jnp.mean((h - m) ** 2, axis=0, keepdims=True)
        return (h - m) * lax.rsqrt(v + BN_EPS) * g + b

    h = jnp.dot(x.astype(jnp.bfloat16), p["w1"].astype(jnp.bfloat16),
                preferred_element_type=jnp.float32)
    h = jnp.maximum(bn(h, p["g1"], p["beta1"]), 0.0)
    h2 = jnp.dot(h.astype(jnp.bfloat16), p["w2"].astype(jnp.bfloat16),
                 preferred_element_type=jnp.float32)
    h2 = bn(h2, p["g2"], p["beta2"])
    return jnp.maximum(h2 + x, 0.0)


if __name__ == "__main__":
    key = jax.random.PRNGKey(0)
    kx, kp = jax.random.split(key)

    # Lane-dense small shapes: F multiple of 128, B multiple of 16 (bf16 sublane packing).
    B, F = 16, 256
    x = jax.random.normal(kx, (B, F), dtype=jnp.float32)
    params = init_params(kp, F)

    ref = residual_block_ref(x, params)

    # 1) fused single-kernel fast path (default dispatch at this size)
    out_fused = jax.block_until_ready(jax.jit(residual_block)(x, params))
    assert out_fused.shape == (B, F) and out_fused.dtype == x.dtype
    err_f = float(jnp.max(jnp.abs(out_fused - ref)))
    assert jnp.allclose(out_fused, ref, atol=2e-2, rtol=2e-2), (
        f"fused path mismatch vs reference: max abs err {err_f:.3e}")

    # 2) tiled two-stage path (used at large shapes), forced here with small tiles for coverage
    tiled_fn = jax.jit(functools.partial(residual_block, force_tiled=True, tn=128, tk=128))
    out_tiled = jax.block_until_ready(tiled_fn(x, params))
    err_t = float(jnp.max(jnp.abs(out_tiled - ref)))
    assert jnp.allclose(out_tiled, ref, atol=2e-2, rtol=2e-2), (
        f"tiled path mismatch vs reference: max abs err {err_t:.3e}")

    print("KERNEL_OK")
</pallas_src>

<mosaic_0001>
module attributes {stable_mosaic.version = 11 : i64} {
  func.func @_fused_kernel(%arg0: memref<16x256xf32, #tpu.memory_space<vmem>>, %arg1: memref<256x256xbf16, #tpu.memory_space<vmem>>, %arg2: memref<256x256xbf16, #tpu.memory_space<vmem>>, %arg3: memref<1x256xf32, #tpu.memory_space<vmem>>, %arg4: memref<1x256xf32, #tpu.memory_space<vmem>>, %arg5: memref<1x256xf32, #tpu.memory_space<vmem>>, %arg6: memref<1x256xf32, #tpu.memory_space<vmem>>, %arg7: memref<16x256xf32, #tpu.memory_space<vmem>>) attributes {dimension_semantics = [], scalar_prefetch = 0 : i64, scratch_operands = 0 : i64, tpu.core_type = #tpu.core_type<tc>} {
    %c0 = arith.constant 0 : index
    %c0_0 = arith.constant 0 : index
    %0 = vector.load %arg0[%c0, %c0_0] : memref<16x256xf32, #tpu.memory_space<vmem>>, vector<16x256xf32>
    %1 = arith.truncf %0 : vector<16x256xf32> to vector<16x256xbf16>
    %c0_1 = arith.constant 0 : index
    %c0_2 = arith.constant 0 : index
    %2 = vector.load %arg1[%c0_1, %c0_2] : memref<256x256xbf16, #tpu.memory_space<vmem>>, vector<256x256xbf16>
    %cst = arith.constant dense<0.000000e+00> : vector<16x256xf32>
    %3 = tpu.matmul %1, %2, %cst {dimension_numbers = #tpu.dot_dimension_numbers<[1], [0], [0], [1], [0, 0, 1, 1], [], []>} : vector<16x256xbf16>, vector<256x256xbf16>, vector<16x256xf32> -> vector<16x256xf32>
    %c0_3 = arith.constant 0 : index
    %c0_4 = arith.constant 0 : index
    %4 = vector.load %arg3[%c0_3, %c0_4] : memref<1x256xf32, #tpu.memory_space<vmem>>, vector<1x256xf32>
    %c0_5 = arith.constant 0 : index
    %c0_6 = arith.constant 0 : index
    %5 = vector.load %arg4[%c0_5, %c0_6] : memref<1x256xf32, #tpu.memory_space<vmem>>, vector<1x256xf32>
    %cst_7 = arith.constant dense<0.000000e+00> : vector<256xf32>
    %6 = vector.multi_reduction <add>, %3, %cst_7 [0] : vector<16x256xf32> to vector<256xf32>
    %7 = vector.shape_cast %6 : vector<256xf32> to vector<1x256xf32>
    %8 = arith.mulf %3, %3 : vector<16x256xf32>
    %cst_8 = arith.constant dense<0.000000e+00> : vector<256xf32>
    %9 = vector.multi_reduction <add>, %8, %cst_8 [0] : vector<16x256xf32> to vector<256xf32>
    %10 = vector.shape_cast %9 : vector<256xf32> to vector<1x256xf32>
    %cst_9 = arith.constant 6.250000e-02 : f32
    %11 = vector.broadcast %cst_9 : f32 to vector<1x256xf32>
    %12 = arith.mulf %7, %11 : vector<1x256xf32>
    %cst_10 = arith.constant 6.250000e-02 : f32
    %13 = vector.broadcast %cst_10 : f32 to vector<1x256xf32>
    %14 = arith.mulf %10, %13 : vector<1x256xf32>
    %15 = arith.mulf %12, %12 : vector<1x256xf32>
    %16 = arith.subf %14, %15 : vector<1x256xf32>
    %cst_11 = arith.constant 0.000000e+00 : f32
    %17 = vector.broadcast %cst_11 : f32 to vector<1x256xf32>
    %18 = arith.maximumf %16, %17 : vector<1x256xf32>
    %cst_12 = arith.constant 9.99999974E-6 : f32
    %19 = vector.broadcast %cst_12 : f32 to vector<1x256xf32>
    %20 = arith.addf %18, %19 : vector<1x256xf32>
    %21 = math.rsqrt %20 : vector<1x256xf32>
    %22 = arith.mulf %4, %21 : vector<1x256xf32>
    %23 = arith.mulf %12, %22 : vector<1x256xf32>
    %24 = arith.subf %5, %23 : vector<1x256xf32>
    %25 = vector.broadcast %22 : vector<1x256xf32> to vector<16x256xf32>
    %26 = arith.mulf %3, %25 : vector<16x256xf32>
    %27 = vector.broadcast %24 : vector<1x256xf32> to vector<16x256xf32>
    %28 = arith.addf %26, %27 : vector<16x256xf32>
    %cst_13 = arith.constant 0.000000e+00 : f32
    %29 = vector.broadcast %cst_13 : f32 to vector<16x256xf32>
    %30 = arith.maximumf %28, %29 : vector<16x256xf32>
    %31 = arith.truncf %30 : vector<16x256xf32> to vector<16x256xbf16>
    %c0_14 = arith.constant 0 : index
    %c0_15 = arith.constant 0 : index
    %32 = vector.load %arg2[%c0_14, %c0_15] : memref<256x256xbf16, #tpu.memory_space<vmem>>, vector<256x256xbf16>
    %cst_16 = arith.constant dense<0.000000e+00> : vector<16x256xf32>
    %33 = tpu.matmul %31, %32, %cst_16 {dimension_numbers = #tpu.dot_dimension_numbers<[1], [0], [0], [1], [0, 0, 1, 1], [], []>} : vector<16x256xbf16>, vector<256x256xbf16>, vector<16x256xf32> -> vector<16x256xf32>
    %c0_17 = arith.constant 0 : index
    %c0_18 = arith.constant 0 : index
    %34 = vector.load %arg5[%c0_17, %c0_18] : memref<1x256xf32, #tpu.memory_space<vmem>>, vector<1x256xf32>
    %c0_19 = arith.constant 0 : index
    %c0_20 = arith.constant 0 : index
    %35 = vector.load %arg6[%c0_19, %c0_20] : memref<1x256xf32, #tpu.memory_space<vmem>>, vector<1x256xf32>
    %cst_21 = arith.constant dense<0.000000e+00> : vector<256xf32>
    %36 = vector.multi_reduction <add>, %33, %cst_21 [0] : vector<16x256xf32> to vector<256xf32>
    %37 = vector.shape_cast %36 : vector<256xf32> to vector<1x256xf32>
    %38 = arith.mulf %33, %33 : vector<16x256xf32>
    %cst_22 = arith.constant dense<0.000000e+00> : vector<256xf32>
    %39 = vector.multi_reduction <add>, %38, %cst_22 [0] : vector<16x256xf32> to vector<256xf32>
    %40 = vector.shape_cast %39 : vector<256xf32> to vector<1x256xf32>
    %cst_23 = arith.constant 6.250000e-02 : f32
    %41 = vector.broadcast %cst_23 : f32 to vector<1x256xf32>
    %42 = arith.mulf %37, %41 : vector<1x256xf32>
    %cst_24 = arith.constant 6.250000e-02 : f32
    %43 = vector.broadcast %cst_24 : f32 to vector<1x256xf32>
    %44 = arith.mulf %40, %43 : vector<1x256xf32>
    %45 = arith.mulf %42, %42 : vector<1x256xf32>
    %46 = arith.subf %44, %45 : vector<1x256xf32>
    %cst_25 = arith.constant 0.000000e+00 : f32
    %47 = vector.broadcast %cst_25 : f32 to vector<1x256xf32>
    %48 = arith.maximumf %46, %47 : vector<1x256xf32>
    %cst_26 = arith.constant 9.99999974E-6 : f32
    %49 = vector.broadcast %cst_26 : f32 to vector<1x256xf32>
    %50 = arith.addf %48, %49 : vector<1x256xf32>
    %51 = math.rsqrt %50 : vector<1x256xf32>
    %52 = arith.mulf %34, %51 : vector<1x256xf32>
    %53 = arith.mulf %42, %52 : vector<1x256xf32>
    %54 = arith.subf %35, %53 : vector<1x256xf32>
    %55 = vector.broadcast %52 : vector<1x256xf32> to vector<16x256xf32>
    %56 = arith.mulf %33, %55 : vector<16x256xf32>
    %57 = vector.broadcast %54 : vector<1x256xf32> to vector<16x256xf32>
    %58 = arith.addf %56, %57 : vector<16x256xf32>
    %59 = arith.addf %58, %0 : vector<16x256xf32>
    %cst_27 = arith.constant 0.000000e+00 : f32
    %60 = vector.broadcast %cst_27 : f32 to vector<16x256xf32>
    %61 = arith.maximumf %59, %60 : vector<16x256xf32>
    %c0_28 = arith.constant 0 : index
    %c0_29 = arith.constant 0 : index
    %62 = vector.load %arg7[%c0_28, %c0_29] : memref<16x256xf32, #tpu.memory_space<vmem>>, vector<16x256xf32>
    tpu.vector_store %arg7[%c0_28, %c0_29], %61 {strides = array<i32>} : memref<16x256xf32, #tpu.memory_space<vmem>>, vector<16x256xf32>,
    return
  }
}

</mosaic_0001>

<llo_original>
// kernel: residual_block.1
$region0: #{residual_block.1}
  #allocation0 [shape = 'u32[]', space=smem, size = 0x4, offset = 0x4, fixed_abs, tag = 'smem constant byte address 0x4 - core index']
  #allocation1 [shape = 'u32[144,128]{1,0:T(1,128)}', space=vmem, size = 0x12000, scoped, tag = 'internal scratch']
  %s0 = inlined_call_operand.vmem [shape: f32[16,256], index: 0, kind: input, shape index: {}]
  %s1 = inlined_call_operand.vmem [shape: bf16[256,256], index: 1, kind: input, shape index: {}]
  %s2 = inlined_call_operand.vmem [shape: bf16[256,256], index: 2, kind: input, shape index: {}]
  %s3 = inlined_call_operand.vmem [shape: f32[1,256], index: 3, kind: input, shape index: {}]
  %s4 = inlined_call_operand.vmem [shape: f32[1,256], index: 4, kind: input, shape index: {}]
  %s5 = inlined_call_operand.vmem [shape: f32[1,256], index: 5, kind: input, shape index: {}]
  %s6 = inlined_call_operand.vmem [shape: f32[1,256], index: 6, kind: input, shape index: {}]
  %s7 = inlined_call_operand.hbm [shape: f32[16,256], index: 7, kind: output, shape index: {}]
  %s8 = sld [smem:[#allocation0]]
  $region38: #{residual_block.1} parent=0
    _
  %s10 = ssub.s32 1, %s8
  %s11 = scalar_select 0, %s10, %s8
  $region1: #{residual_block.1} parent=0
    #allocation2 [shape = 'u8[16384]{0}', space=vmem, size = 0x4000, scoped, tag = 'output window, operand 0, single buffered']
    #allocation3 [shape = 's32[1]{0}', space=sflag, size = 0x4, scoped, tag = 'scoped memory for residual_block.1']
    %12 = vsyncpa [#allocation3], 0
    // Predicated region
    $region2: #{residual_block.1} parent=1 // pred_check
      _
    $region3: #{residual_block.1} parent=1 // pred_check_branch
      %14 = sbr.rel (0) target = $region5
    $region4: #{residual_block.1} parent=1 // pred_region
      _
    $region5: #{residual_block.1} parent=1 // pred_fallthru
      _
    // Predicated region
    $region6: #{residual_block.1} parent=1 // pred_check
      _
    $region7: #{residual_block.1} parent=1 // pred_check_branch
      %16 = sbr.rel (0) target = $region9
    $region8: #{residual_block.1} parent=1 // pred_region
      _
    $region9: #{residual_block.1} parent=1 // pred_fallthru
      _
    // Predicated region
    $region10: #{residual_block.1} parent=1 // pred_check
      _
    $region11: #{residual_block.1} parent=1 // pred_check_branch
      %18 = sbr.rel (0) target = $region13
    $region12: #{residual_block.1} parent=1 // pred_region
      _
    $region13: #{residual_block.1} parent=1 // pred_fallthru
      _
    // Predicated region
    $region14: #{residual_block.1} parent=1 // pred_check
      _
    $region15: #{residual_block.1} parent=1 // pred_check_branch
      %20 = sbr.rel (0) target = $region17
    $region16: #{residual_block.1} parent=1 // pred_region
      _
    $region17: #{residual_block.1} parent=1 // pred_fallthru
      _
    // Predicated region
    $region18: #{residual_block.1} parent=1 // pred_check
      _
    $region19: #{residual_block.1} parent=1 // pred_check_branch
      %22 = sbr.rel (0) target = $region21
    $region20: #{residual_block.1} parent=1 // pred_region
      _
    $region21: #{residual_block.1} parent=1 // pred_fallthru
      _
    // Predicated region
    $region22: #{residual_block.1} parent=1 // pred_check
      _
    $region23: #{residual_block.1} parent=1 // pred_check_branch
      %24 = sbr.rel (0) target = $region25
    $region24: #{residual_block.1} parent=1 // pred_region
      _
    $region25: #{residual_block.1} parent=1 // pred_fallthru
      _
    // Predicated region
    $region26: #{residual_block.1} parent=1 // pred_check
      _
    $region27: #{residual_block.1} parent=1 // pred_check_branch
      %26 = sbr.rel (0) target = $region29
    $region28: #{residual_block.1} parent=1 // pred_region
      _
    $region29: #{residual_block.1} parent=1 // pred_fallthru
      _
    %v27 = vld [vmem:[%s0] sm:$0xff]
    %v28 = vld [vmem:[%s0 + $0x8] sm:$0xff]
    %v29 = vld [vmem:[%s0 + $0x10] sm:$0xff]
    %v30 = vld [vmem:[%s0 + $0x18] sm:$0xff]
    %v31 = vpack.c.bf16 %v29, %v27
    %v32 = vpack.c.bf16 %v30, %v28
    %v33 = vld [vmem:[%s1] sm:$0xff]
    %v34 = vld [vmem:[%s1 + $0x8] sm:$0xff]
    %v35 = vld [vmem:[%s1 + $0x10] sm:$0xff]
    %v36 = vld [vmem:[%s1 + $0x18] sm:$0xff]
    %v37 = vld [vmem:[%s1 + $0x20] sm:$0xff]
    %v38 = vld [vmem:[%s1 + $0x28] sm:$0xff]
    %v39 = vld [vmem:[%s1 + $0x30] sm:$0xff]
    %v40 = vld [vmem:[%s1 + $0x38] sm:$0xff]
    %v41 = vld [vmem:[%s1 + $0x40] sm:$0xff]
    %v42 = vld [vmem:[%s1 + $0x48] sm:$0xff]
    %v43 = vld [vmem:[%s1 + $0x50] sm:$0xff]
    %v44 = vld [vmem:[%s1 + $0x58] sm:$0xff]
    %v45 = vld [vmem:[%s1 + $0x60] sm:$0xff]
    %v46 = vld [vmem:[%s1 + $0x68] sm:$0xff]
    %v47 = vld [vmem:[%s1 + $0x70] sm:$0xff]
    %v48 = vld [vmem:[%s1 + $0x78] sm:$0xff]
    %v49 = vld [vmem:[%s1 + $0x80] sm:$0xff]
    %v50 = vld [vmem:[%s1 + $0x88] sm:$0xff]
    %v51 = vld [vmem:[%s1 + $0x90] sm:$0xff]
    %v52 = vld [vmem:[%s1 + $0x98] sm:$0xff]
    %v53 = vld [vmem:[%s1 + $0xa0] sm:$0xff]
    %v54 = vld [vmem:[%s1 + $0xa8] sm:$0xff]
    %v55 = vld [vmem:[%s1 + $0xb0] sm:$0xff]
    %v56 = vld [vmem:[%s1 + $0xb8] sm:$0xff]
    %v57 = vld [vmem:[%s1 + $0xc0] sm:$0xff]
    %v58 = vld [vmem:[%s1 + $0xc8] sm:$0xff]
    %v59 = vld [vmem:[%s1 + $0xd0] sm:$0xff]
    %v60 = vld [vmem:[%s1 + $0xd8] sm:$0xff]
    %v61 = vld [vmem:[%s1 + $0xe0] sm:$0xff]
    %v62 = vld [vmem:[%s1 + $0xe8] sm:$0xff]
    %v63 = vld [vmem:[%s1 + $0xf0] sm:$0xff]
    %v64 = vld [vmem:[%s1 + $0xf8] sm:$0xff]
    %v97 = vunpack.c.l.b16 %v33
    %v98 = vunpack.c.h.b16 %v33
    %v99 = vunpack.c.l.b16 %v34
    %v100 = vunpack.c.h.b16 %v34
    %v101 = vunpack.c.l.b16 %v35
    %v102 = vunpack.c.h.b16 %v35
    %v103 = vunpack.c.l.b16 %v36
    %v104 = vunpack.c.h.b16 %v36
    %v105 = vunpack.c.l.b16 %v37
    %v106 = vunpack.c.h.b16 %v37
    %v107 = vunpack.c.l.b16 %v38
    %v108 = vunpack.c.h.b16 %v38
    %v109 = vunpack.c.l.b16 %v39
    %v110 = vunpack.c.h.b16 %v39
    %v111 = vunpack.c.l.b16 %v40
    %v112 = vunpack.c.h.b16 %v40
    %v113 = vunpack.c.l.b16 %v41
    %v114 = vunpack.c.h.b16 %v41
    %v115 = vunpack.c.l.b16 %v42
    %v116 = vunpack.c.h.b16 %v42
    %v117 = vunpack.c.l.b16 %v43
    %v118 = vunpack.c.h.b16 %v43
    %v119 = vunpack.c.l.b16 %v44
    %v120 = vunpack.c.h.b16 %v44
    %v121 = vunpack.c.l.b16 %v45
    %v122 = vunpack.c.h.b16 %v45
    %v123 = vunpack.c.l.b16 %v46
    %v124 = vunpack.c.h.b16 %v46
    %v125 = vunpack.c.l.b16 %v47
    %v126 = vunpack.c.h.b16 %v47
    %v127 = vunpack.c.l.b16 %v48
    %v128 = vunpack.c.h.b16 %v48
    %v129 = vunpack.c.l.b16 %v49
    %v130 = vunpack.c.h.b16 %v49
    %v131 = vunpack.c.l.b16 %v50
    %v132 = vunpack.c.h.b16 %v50
    %v133 = vunpack.c.l.b16 %v51
    %v134 = vunpack.c.h.b16 %v51
    %v135 = vunpack.c.l.b16 %v52
    %v136 = vunpack.c.h.b16 %v52
    %v137 = vunpack.c.l.b16 %v53
    %v138 = vunpack.c.h.b16 %v53
    %v139 = vunpack.c.l.b16 %v54
    %v140 = vunpack.c.h.b16 %v54
    %v141 = vunpack.c.l.b16 %v55
    %v142 = vunpack.c.h.b16 %v55
    %v143 = vunpack.c.l.b16 %v56
    %v144 = vunpack.c.h.b16 %v56
    %v145 = vunpack.c.l.b16 %v57
    %v146 = vunpack.c.h.b16 %v57
    %v147 = vunpack.c.l.b16 %v58
    %v148 = vunpack.c.h.b16 %v58
    %v149 = vunpack.c.l.b16 %v59
    %v150 = vunpack.c.h.b16 %v59
    %v151 = vunpack.c.l.b16 %v60
    %v152 = vunpack.c.h.b16 %v60
    %v153 = vunpack.c.l.b16 %v61
    %v154 = vunpack.c.h.b16 %v61
    %v155 = vunpack.c.l.b16 %v62
    %v156 = vunpack.c.h.b16 %v62
    %v157 = vunpack.c.l.b16 %v63
    %v158 = vunpack.c.h.b16 %v63
    %v159 = vunpack.c.l.b16 %v64
    %v160 = vunpack.c.h.b16 %v64
    %v161 = vpack.c.b16 %v99, %v97
    %v162 = vpack.c.b16 %v100, %v98
    %v163 = vpack.c.b16 %v103, %v101
    %v164 = vpack.c.b16 %v104, %v102
    %v165 = vpack.c.b16 %v107, %v105
    %v166 = vpack.c.b16 %v108, %v106
    %v167 = vpack.c.b16 %v111, %v109
    %v168 = vpack.c.b16 %v112, %v110
    %v169 = vpack.c.b16 %v115, %v113
    %v170 = vpack.c.b16 %v116, %v114
    %v171 = vpack.c.b16 %v119, %v117
    %v172 = vpack.c.b16 %v120, %v118
    %v173 = vpack.c.b16 %v123, %v121
    %v174 = vpack.c.b16 %v124, %v122
    %v175 = vpack.c.b16 %v127, %v125
    %v176 = vpack.c.b16 %v128, %v126
    %v177 = vpack.c.b16 %v131, %v129
    %v178 = vpack.c.b16 %v132, %v130
    %v179 = vpack.c.b16 %v135, %v133
    %v180 = vpack.c.b16 %v136, %v134
    %v181 = vpack.c.b16 %v139, %v137
    %v182 = vpack.c.b16 %v140, %v138
    %v183 = vpack.c.b16 %v143, %v141
    %v184 = vpack.c.b16 %v144, %v142
    %v185 = vpack.c.b16 %v147, %v145
    %v186 = vpack.c.b16 %v148, %v146
    %v187 = vpack.c.b16 %v151, %v149
    %v188 = vpack.c.b16 %v152, %v150
    %v189 = vpack.c.b16 %v155, %v153
    %v190 = vpack.c.b16 %v156, %v154
    %v191 = vpack.c.b16 %v159, %v157
    %v192 = vpack.c.b16 %v160, %v158
    %225 = vmatprep.subr.bf16.mxu0 %v176
    %226 = vmatpush1.bf16.msra.mxu0 %v175
    %227 = vmatprep.subr.bf16.mxu0 %v174
    %228 = vmatpush1.bf16.msra.mxu0 %v173
    %229 = vmatprep.subr.bf16.mxu0 %v172
    %230 = vmatpush1.bf16.msra.mxu0 %v171
    %231 = vmatprep.subr.bf16.mxu0 %v170
    %232 = vmatpush1.bf16.msra.mxu0 %v169
    %233 = vmatprep.subr.bf16.mxu0 %v168
    %234 = vmatpush1.bf16.msra.mxu0 %v167
    %235 = vmatprep.subr.bf16.mxu0 %v166
    %236 = vmatpush1.bf16.msra.mxu0 %v165
    %237 = vmatprep.subr.bf16.mxu0 %v164
    %238 = vmatpush1.bf16.msra.mxu0 %v163
    %239 = vmatprep.subr.bf16.mxu0 %v162
    %240 = vmatpush1.bf16.msra.mxu0 %v161
    %241 = vmatprep.subr.bf16.mxu0 %v192
    %242 = vmatpush2.bf16.msra.mxu0 %v191
    %243 = vmatprep.subr.bf16.mxu0 %v190
    %244 = vmatpush2.bf16.msra.mxu0 %v189
    %245 = vmatprep.subr.bf16.mxu0 %v188
    %246 = vmatpush2.bf16.msra.mxu0 %v187
    %247 = vmatprep.subr.bf16.mxu0 %v186
    %248 = vmatpush2.bf16.msra.mxu0 %v185
    %249 = vmatprep.subr.bf16.mxu0 %v184
    %250 = vmatpush2.bf16.msra.mxu0 %v183
    %251 = vmatprep.subr.bf16.mxu0 %v182
    %252 = vmatpush2.bf16.msra.mxu0 %v181
    %253 = vmatprep.subr.bf16.mxu0 %v180
    %254 = vmatpush2.bf16.msra.mxu0 %v179
    %255 = vmatprep.subr.bf16.mxu0 %v178
    %256 = vmatpush2.bf16.msra.mxu0 %v177
    %257 = vmatprep.mubr.bf16.mxu0 %v32
    %258 = vmatmul.mubr.bf16.gmra.mxu0 %v31
    %v259 = vpop.f32.mrf.mxu0
    %v260 = vadd.f32 0.0, %v259
    %v261 = vpop.f32.mrf.mxu0
    %v262 = vadd.f32 0.0, %v261
    %v263 = vpop.f32.mrf.mxu0
    %v264 = vadd.f32 0.0, %v263
    %v265 = vpop.f32.mrf.mxu0
    %v266 = vadd.f32 0.0, %v265
    %267 = vdwg.mxu0
    %v268 = vld [vmem:[%s3] sm:$0x3]
    %v269 = vld [vmem:[%s4] sm:$0x3]
    %v270 = vadd.f32 %v260, %v264
    %v271 = vrot.slane %v270, 4
    %v272 = vadd.f32 %v270, %v271
    %v273 = vrot.slane %v272, 2
    %v274 = vadd.f32 %v272, %v273
    %v275 = vrot.slane %v274, 1
    %v276 = vadd.f32 %v274, %v275
    %v277 = vadd.f32 %v262, %v266
    %v278 = vrot.slane %v277, 4
    %v279 = vadd.f32 %v277, %v278
    %v280 = vrot.slane %v279, 2
    %v281 = vadd.f32 %v279, %v280
    %v282 = vrot.slane %v281, 1
    %v283 = vadd.f32 %v281, %v282
    %v284 = vmul.f32 %v260, %v260
    %v285 = vmul.f32 %v262, %v262
    %v286 = vmul.f32 %v264, %v264
    %v287 = vmul.f32 %v266, %v266
    %v288 = vadd.f32 %v284, %v286
    %v289 = vrot.slane %v288, 4
    %v290 = vadd.f32 %v288, %v289
    %v291 = vrot.slane %v290, 2
    %v292 = vadd.f32 %v290, %v291
    %v293 = vrot.slane %v292, 1
    %v294 = vadd.f32 %v292, %v293
    %v295 = vadd.f32 %v285, %v287
    %v296 = vrot.slane %v295, 4
    %v297 = vadd.f32 %v295, %v296
    %v298 = vrot.slane %v297, 2
    %v299 = vadd.f32 %v297, %v298
    %v300 = vrot.slane %v299, 1
    %v301 = vadd.f32 %v299, %v300
    %v302 = vmul.f32 %v276, 0.0625
    %v303 = vmul.f32 %v283, 0.0625
    %v304 = vmul.f32 %v294, 0.0625
    %v305 = vmul.f32 %v301, 0.0625
    %v306 = vmul.f32 %v302, %v302
    %v307 = vmul.f32 %v303, %v303
    %v308 = vsub.f32 %v304, %v306
    %v309 = vsub.f32 %v305, %v307
    %v310 = vmax.f32 %v308, 0.0
    %v311 = vmax.f32 %v309, 0.0
    %v312 = vadd.f32 %v310, 1e-05
    %v313 = vadd.f32 %v311, 1e-05
    %v314 = vrsqrt.pop %v312
    %v315 = vrsqrt.pop %v313
    %v318 = vcombine.low %v314, %v315
    %v320 = vunpack.c.l.s4 1966171168
    %v321 = vunpack.c.0.s8 %v320
    %v322 = vlaneseq
    %v323 = vshrl.u32 %v322, 7
    %v324 = vsub.s32 %v321, %v323
    %v325 = vrot.slane %v318, %v324
    %v327 = vunpack.c.l.s4 1966171168
    %v328 = vunpack.c.0.s8 %v327
    %v329 = vlaneseq
    %v330 = vshrl.u32 %v329, 7
    %v331 = vsub.s32 %v328, %v330
    %v332 = vrot.slane %v325, %v331
    %v334 = vmul.f32 %v268, %v332
    %v336 = vlaneseq
    %v337 = vshrl.u32 %v336, 7
    %v338 = vsub.s32 0, %v337
    %v339 = vrot.slane %v334, %v338
    %v340 = vlaneseq
    %v341 = vshrl.u32 %v340, 7
    %v342 = vsub.s32 1, %v341
    %v343 = vrot.slane %v334, %v342
    %v346 = vmul.f32 %v302, %v339
    %v347 = vmul.f32 %v303, %v343
    %v350 = vcombine.low %v346, %v347
    %v352 = vunpack.c.l.s4 1966171168
    %v353 = vunpack.c.0.s8 %v352
    %v354 = vlaneseq
    %v355 = vshrl.u32 %v354, 7
    %v356 = vsub.s32 %v353, %v355
    %v357 = vrot.slane %v350, %v356
    %v359 = vunpack.c.l.s4 1966171168
    %v360 = vunpack.c.0.s8 %v359
    %v361 = vlaneseq
    %v362 = vshrl.u32 %v361, 7
    %v363 = vsub.s32 %v360, %v362
    %v364 = vrot.slane %v357, %v363
    %v366 = vsub.f32 %v269, %v364
    %v367 = vmul.f32 %v260, %v339
    %v368 = vmul.f32 %v262, %v343
    %v369 = vmul.f32 %v264, %v339
    %v370 = vmul.f32 %v266, %v343
    %v372 = vlaneseq
    %v373 = vshrl.u32 %v372, 7
    %v374 = vsub.s32 0, %v373
    %v375 = vrot.slane %v366, %v374
    %v376 = vlaneseq
    %v377 = vshrl.u32 %v376, 7
    %v378 = vsub.s32 1, %v377
    %v379 = vrot.slane %v366, %v378
    %v382 = vadd.f32 %v367, %v375
    %v383 = vadd.f32 %v368, %v379
    %v384 = vadd.f32 %v369, %v375
    %v385 = vadd.f32 %v370, %v379
    %v386 = vmax.f32 %v382, 0.0
    %v387 = vmax.f32 %v383, 0.0
    %v388 = vmax.f32 %v384, 0.0
    %v389 = vmax.f32 %v385, 0.0
    %v390 = vpack.c.bf16 %v388, %v386
    %v391 = vpack.c.bf16 %v389, %v387
    %v392 = vld [vmem:[%s2] sm:$0xff]
    %v393 = vld [vmem:[%s2 + $0x8] sm:$0xff]
    %v394 = vld [vmem:[%s2 + $0x10] sm:$0xff]
    %v395 = vld [vmem:[%s2 + $0x18] sm:$0xff]
    %v396 = vld [vmem:[%s2 + $0x20] sm:$0xff]
    %v397 = vld [vmem:[%s2 + $0x28] sm:$0xff]
    %v398 = vld [vmem:[%s2 + $0x30] sm:$0xff]
    %v399 = vld [vmem:[%s2 + $0x38] sm:$0xff]
    %v400 = vld [vmem:[%s2 + $0x40] sm:$0xff]
    %v401 = vld [vmem:[%s2 + $0x48] sm:$0xff]
    %v402 = vld [vmem:[%s2 + $0x50] sm:$0xff]
    %v403 = vld [vmem:[%s2 + $0x58] sm:$0xff]
    %v404 = vld [vmem:[%s2 + $0x60] sm:$0xff]
    %v405 = vld [vmem:[%s2 + $0x68] sm:$0xff]
    %v406 = vld [vmem:[%s2 + $0x70] sm:$0xff]
    %v407 = vld [vmem:[%s2 + $0x78] sm:$0xff]
    %v408 = vld [vmem:[%s2 + $0x80] sm:$0xff]
    %v409 = vld [vmem:[%s2 + $0x88] sm:$0xff]
    %v410 = vld [vmem:[%s2 + $0x90] sm:$0xff]
    %v411 = vld [vmem:[%s2 + $0x98] sm:$0xff]
    %v412 = vld [vmem:[%s2 + $0xa0] sm:$0xff]
    %v413 = vld [vmem:[%s2 + $0xa8] sm:$0xff]
    %v414 = vld [vmem:[%s2 + $0xb0] sm:$0xff]
    %v415 = vld [vmem:[%s2 + $0xb8] sm:$0xff]
    %v416 = vld [vmem:[%s2 + $0xc0] sm:$0xff]
    %v417 = vld [vmem:[%s2 + $0xc8] sm:$0xff]
    %v418 = vld [vmem:[%s2 + $0xd0] sm:$0xff]
    %v419 = vld [vmem:[%s2 + $0xd8] sm:$0xff]
    %v420 = vld [vmem:[%s2 + $0xe0] sm:$0xff]
    %v421 = vld [vmem:[%s2 + $0xe8] sm:$0xff]
    %v422 = vld [vmem:[%s2 + $0xf0] sm:$0xff]
    %v423 = vld [vmem:[%s2 + $0xf8] sm:$0xff]
    %v456 = vunpack.c.l.b16 %v392
    %v457 = vunpack.c.h.b16 %v392
    %v458 = vunpack.c.l.b16 %v393
    %v459 = vunpack.c.h.b16 %v393
    %v460 = vunpack.c.l.b16 %v394
    %v461 = vunpack.c.h.b16 %v394
    %v462 = vunpack.c.l.b16 %v395
    %v463 = vunpack.c.h.b16 %v395
    %v464 = vunpack.c.l.b16 %v396
    %v465 = vunpack.c.h.b16 %v396
    %v466 = vunpack.c.l.b16 %v397
    %v467 = vunpack.c.h.b16 %v397
    %v468 = vunpack.c.l.b16 %v398
    %v469 = vunpack.c.h.b16 %v398
    %v470 = vunpack.c.l.b16 %v399
    %v471 = vunpack.c.h.b16 %v399
    %v472 = vunpack.c.l.b16 %v400
    %v473 = vunpack.c.h.b16 %v400
    %v474 = vunpack.c.l.b16 %v401
    %v475 = vunpack.c.h.b16 %v401
    %v476 = vunpack.c.l.b16 %v402
    %v477 = vunpack.c.h.b16 %v402
    %v478 = vunpack.c.l.b16 %v403
    %v479 = vunpack.c.h.b16 %v403
    %v480 = vunpack.c.l.b16 %v404
    %v481 = vunpack.c.h.b16 %v404
    %v482 = vunpack.c.l.b16 %v405
    %v483 = vunpack.c.h.b16 %v405
    %v484 = vunpack.c.l.b16 %v406
    %v485 = vunpack.c.h.b16 %v406
    %v486 = vunpack.c.l.b16 %v407
    %v487 = vunpack.c.h.b16 %v407
    %v488 = vunpack.c.l.b16 %v408
    %v489 = vunpack.c.h.b16 %v408
    %v490 = vunpack.c.l.b16 %v409
    %v491 = vunpack.c.h.b16 %v409
    %v492 = vunpack.c.l.b16 %v410
    %v493 = vunpack.c.h.b16 %v410
    %v494 = vunpack.c.l.b16 %v411
    %v495 = vunpack.c.h.b16 %v411
    %v496 = vunpack.c.l.b16 %v412
    %v497 = vunpack.c.h.b16 %v412
    %v498 = vunpack.c.l.b16 %v413
    %v499 = vunpack.c.h.b16 %v413
    %v500 = vunpack.c.l.b16 %v414
    %v501 = vunpack.c.h.b16 %v414
    %v502 = vunpack.c.l.b16 %v415
    %v503 = vunpack.c.h.b16 %v415
    %v504 = vunpack.c.l.b16 %v416
    %v505 = vunpack.c.h.b16 %v416
    %v506 = vunpack.c.l.b16 %v417
    %v507 = vunpack.c.h.b16 %v417
    %v508 = vunpack.c.l.b16 %v418
    %v509 = vunpack.c.h.b16 %v418
    %v510 = vunpack.c.l.b16 %v419
    %v511 = vunpack.c.h.b16 %v419
    %v512 = vunpack.c.l.b16 %v420
    %v513 = vunpack.c.h.b16 %v420
    %v514 = vunpack.c.l.b16 %v421
    %v515 = vunpack.c.h.b16 %v421
    %v516 = vunpack.c.l.b16 %v422
    %v517 = vunpack.c.h.b16 %v422
    %v518 = vunpack.c.l.b16 %v423
    %v519 = vunpack.c.h.b16 %v423
    %v520 = vpack.c.b16 %v458, %v456
    %v521 = vpack.c.b16 %v459, %v457
    %v522 = vpack.c.b16 %v462, %v460
    %v523 = vpack.c.b16 %v463, %v461
    %v524 = vpack.c.b16 %v466, %v464
    %v525 = vpack.c.b16 %v467, %v465
    %v526 = vpack.c.b16 %v470, %v468
    %v527 = vpack.c.b16 %v471, %v469
    %v528 = vpack.c.b16 %v474, %v472
    %v529 = vpack.c.b16 %v475, %v473
    %v530 = vpack.c.b16 %v478, %v476
    %v531 = vpack.c.b16 %v479, %v477
    %v532 = vpack.c.b16 %v482, %v480
    %v533 = vpack.c.b16 %v483, %v481
    %v534 = vpack.c.b16 %v486, %v484
    %v535 = vpack.c.b16 %v487, %v485
    %v536 = vpack.c.b16 %v490, %v488
    %v537 = vpack.c.b16 %v491, %v489
    %v538 = vpack.c.b16 %v494, %v492
    %v539 = vpack.c.b16 %v495, %v493
    %v540 = vpack.c.b16 %v498, %v496
    %v541 = vpack.c.b16 %v499, %v497
    %v542 = vpack.c.b16 %v502, %v500
    %v543 = vpack.c.b16 %v503, %v501
    %v544 = vpack.c.b16 %v506, %v504
    %v545 = vpack.c.b16 %v507, %v505
    %v546 = vpack.c.b16 %v510, %v508
    %v547 = vpack.c.b16 %v511, %v509
    %v548 = vpack.c.b16 %v514, %v512
    %v549 = vpack.c.b16 %v515, %v513
    %v550 = vpack.c.b16 %v518, %v516
    %v551 = vpack.c.b16 %v519, %v517
    %584 = vmatprep.subr.bf16.mxu0 %v535
    %585 = vmatpush1.bf16.msra.mxu0 %v534
    %586 = vmatprep.subr.bf16.mxu0 %v533
    %587 = vmatpush1.bf16.msra.mxu0 %v532
    %588 = vmatprep.subr.bf16.mxu0 %v531
    %589 = vmatpush1.bf16.msra.mxu0 %v530
    %590 = vmatprep.subr.bf16.mxu0 %v529
    %591 = vmatpush1.bf16.msra.mxu0 %v528
    %592 = vmatprep.subr.bf16.mxu0 %v527
    %593 = vmatpush1.bf16.msra.mxu0 %v526
    %594 = vmatprep.subr.bf16.mxu0 %v525
    %595 = vmatpush1.bf16.msra.mxu0 %v524
    %596 = vmatprep.subr.bf16.mxu0 %v523
    %597 = vmatpush1.bf16.msra.mxu0 %v522
    %598 = vmatprep.subr.bf16.mxu0 %v521
    %599 = vmatpush1.bf16.msra.mxu0 %v520
    %600 = vmatprep.subr.bf16.mxu0 %v551
    %601 = vmatpush2.bf16.msra.mxu0 %v550
    %602 = vmatprep.subr.bf16.mxu0 %v549
    %603 = vmatpush2.bf16.msra.mxu0 %v548
    %604 = vmatprep.subr.bf16.mxu0 %v547
    %605 = vmatpush2.bf16.msra.mxu0 %v546
    %606 = vmatprep.subr.bf16.mxu0 %v545
    %607 = vmatpush2.bf16.msra.mxu0 %v544
    %608 = vmatprep.subr.bf16.mxu0 %v543
    %609 = vmatpush2.bf16.msra.mxu0 %v542
    %610 = vmatprep.subr.bf16.mxu0 %v541
    %611 = vmatpush2.bf16.msra.mxu0 %v540
    %612 = vmatprep.subr.bf16.mxu0 %v539
    %613 = vmatpush2.bf16.msra.mxu0 %v538
    %614 = vmatprep.subr.bf16.mxu0 %v537
    %615 = vmatpush2.bf16.msra.mxu0 %v536
    %616 = vmatprep.mubr.bf16.mxu0 %v391
    %617 = vmatmul.mubr.bf16.gmra.mxu0 %v390
    %v618 = vpop.f32.mrf.mxu0
    %v619 = vadd.f32 0.0, %v618
    %v620 = vpop.f32.mrf.mxu0
    %v621 = vadd.f32 0.0, %v620
    %v622 = vpop.f32.mrf.mxu0
    %v623 = vadd.f32 0.0, %v622
    %v624 = vpop.f32.mrf.mxu0
    %v625 = vadd.f32 0.0, %v624
    %626 = vdwg.mxu0
    %v627 = vld [vmem:[%s5] sm:$0x3]
    %v628 = vld [vmem:[%s6] sm:$0x3]
    %v629 = vadd.f32 %v619, %v623
    %v630 = vrot.slane %v629, 4
    %v631 = vadd.f32 %v629, %v630
    %v632 = vrot.slane %v631, 2
    %v633 = vadd.f32 %v631, %v632
    %v634 = vrot.slane %v633, 1
    %v635 = vadd.f32 %v633, %v634
    %v636 = vadd.f32 %v621, %v625
    %v637 = vrot.slane %v636, 4
    %v638 = vadd.f32 %v636, %v637
    %v639 = vrot.slane %v638, 2
    %v640 = vadd.f32 %v638, %v639
    %v641 = vrot.slane %v640, 1
    %v642 = vadd.f32 %v640, %v641
    %v643 = vmul.f32 %v619, %v619
    %v644 = vmul.f32 %v621, %v621
    %v645 = vmul.f32 %v623, %v623
    %v646 = vmul.f32 %v625, %v625
    %v647 = vadd.f32 %v643, %v645
    %v648 = vrot.slane %v647, 4
    %v649 = vadd.f32 %v647, %v648
    %v650 = vrot.slane %v649, 2
    %v651 = vadd.f32 %v649, %v650
    %v652 = vrot.slane %v651, 1
    %v653 = vadd.f32 %v651, %v652
    %v654 = vadd.f32 %v644, %v646
    %v655 = vrot.slane %v654, 4
    %v656 = vadd.f32 %v654, %v655
    %v657 = vrot.slane %v656, 2
    %v658 = vadd.f32 %v656, %v657
    %v659 = vrot.slane %v658, 1
    %v660 = vadd.f32 %v658, %v659
    %v661 = vmul.f32 %v635, 0.0625
    %v662 = vmul.f32 %v642, 0.0625
    %v663 = vmul.f32 %v653, 0.0625
    %v664 = vmul.f32 %v660, 0.0625
    %v665 = vmul.f32 %v661, %v661
    %v666 = vmul.f32 %v662, %v662
    %v667 = vsub.f32 %v663, %v665
    %v668 = vsub.f32 %v664, %v666
    %v669 = vmax.f32 %v667, 0.0
    %v670 = vmax.f32 %v668, 0.0
    %v671 = vadd.f32 %v669, 1e-05
    %v672 = vadd.f32 %v670, 1e-05
    %v673 = vrsqrt.pop %v671
    %v674 = vrsqrt.pop %v672
    %v677 = vcombine.low %v673, %v674
    %v679 = vunpack.c.l.s4 1966171168
    %v680 = vunpack.c.0.s8 %v679
    %v681 = vlaneseq
    %v682 = vshrl.u32 %v681, 7
    %v683 = vsub.s32 %v680, %v682
    %v684 = vrot.slane %v677, %v683
    %v686 = vunpack.c.l.s4 1966171168
    %v687 = vunpack.c.0.s8 %v686
    %v688 = vlaneseq
    %v689 = vshrl.u32 %v688, 7
    %v690 = vsub.s32 %v687, %v689
    %v691 = vrot.slane %v684, %v690
    %v693 = vmul.f32 %v627, %v691
    %v695 = vlaneseq
    %v696 = vshrl.u32 %v695, 7
    %v697 = vsub.s32 0, %v696
    %v698 = vrot.slane %v693, %v697
    %v699 = vlaneseq
    %v700 = vshrl.u32 %v699, 7
    %v701 = vsub.s32 1, %v700
    %v702 = vrot.slane %v693, %v701
    %v705 = vmul.f32 %v661, %v698
    %v706 = vmul.f32 %v662, %v702
    %v709 = vcombine.low %v705, %v706
    %v711 = vunpack.c.l.s4 1966171168
    %v712 = vunpack.c.0.s8 %v711
    %v713 = vlaneseq
    %v714 = vshrl.u32 %v713, 7
    %v715 = vsub.s32 %v712, %v714
    %v716 = vrot.slane %v709, %v715
    %v718 = vunpack.c.l.s4 1966171168
    %v719 = vunpack.c.0.s8 %v718
    %v720 = vlaneseq
    %v721 = vshrl.u32 %v720, 7
    %v722 = vsub.s32 %v719, %v721
    %v723 = vrot.slane %v716, %v722
    %v725 = vsub.f32 %v628, %v723
    %v726 = vmul.f32 %v619, %v698
    %v727 = vmul.f32 %v621, %v702
    %v728 = vmul.f32 %v623, %v698
    %v729 = vmul.f32 %v625, %v702
    %v731 = vlaneseq
    %v732 = vshrl.u32 %v731, 7
    %v733 = vsub.s32 0, %v732
    %v734 = vrot.slane %v725, %v733
    %v735 = vlaneseq
    %v736 = vshrl.u32 %v735, 7
    %v737 = vsub.s32 1, %v736
    %v738 = vrot.slane %v725, %v737
    %v741 = vadd.f32 %v726, %v734
    %v742 = vadd.f32 %v727, %v738
    %v743 = vadd.f32 %v728, %v734
    %v744 = vadd.f32 %v729, %v738
    %v745 = vadd.f32 %v741, %v27
    %v746 = vadd.f32 %v742, %v28
    %v747 = vadd.f32 %v743, %v29
    %v748 = vadd.f32 %v744, %v30
    %v749 = vmax.f32 %v745, 0.0
    %v750 = vmax.f32 %v746, 0.0
    %v751 = vmax.f32 %v747, 0.0
    %v752 = vmax.f32 %v748, 0.0
    %753 = vst [vmem:[#allocation2] sm:$0xff] %v749
    %754 = vst [vmem:[#allocation2 + $0x8] sm:$0xff] %v750
    %755 = vst [vmem:[#allocation2 + $0x10] sm:$0xff] %v751
    %756 = vst [vmem:[#allocation2 + $0x18] sm:$0xff] %v752
    // Predicated region
    $region30: #{residual_block.1} parent=1 // pred_check
      _
    $region31: #{residual_block.1} parent=1 // pred_check_branch
      %758 = sbr.rel (0) target = $region33
    $region32: #{residual_block.1} parent=1 // pred_region
      %s760 = ssub.s32 512, 512
      %761 = vsyncadd [#allocation3], %s760
      %s762 = sshll.u32 [#allocation2], 4
      %s763 = int_to_ptr.vmem [resolvable:$true] %s762
      %768 = dma.vmem_to_hbm [thread:$0]  %s763, 512, %s7, [#allocation3], 256, 256, 16
    $region33: #{residual_block.1} parent=1 // pred_fallthru
      _
    // Predicated region
    $region34: #{residual_block.1} parent=1 // pred_check
      _
    $region35: #{residual_block.1} parent=1 // pred_check_branch
      %770 = sbr.rel (0) target = $region37
    $region36: #{residual_block.1} parent=1 // pred_region
      %771 = dma.done [#allocation3], 512
    $region37: #{residual_block.1} parent=1 // pred_fallthru
      _
    %772 = vsyncpa [#allocation3], 1

</llo_original>
